<compile_context>
chip_gen: v5e
topology: v5e:2x2
jax: 0.10.0
libtpu: 0.0.40
codegen_flags: <defaults>
</compile_context>

<pallas_src>
import math

import jax
import jax.numpy as jnp
from jax.experimental import pallas as pl
from jax.experimental.pallas import tpu as pltpu


def _attention_kernel(x_ref, wqkv_ref, wo_ref, out_ref, attn_ref):
    # One grid step == one block of Bt batch elements (whole batch at demo size).
    Bt, S, D = x_ref.shape

    # Flatten batch*seq into rows and do ONE fused QKV matmul on the MXU
    # (bf16 operands, f32 accumulation). The 1/sqrt(D) scale is pre-folded into wq.
    x = x_ref[...].reshape(Bt * S, D).astype(jnp.bfloat16)
    qkv = jnp.dot(x, wqkv_ref[...], preferred_element_type=jnp.float32)   # (Bt*S, 3D)

    q = qkv[:, :D].reshape(Bt, S, D)
    k = qkv[:, D:2 * D].reshape(Bt, S, D)
    v = qkv[:, 2 * D:].reshape(Bt, S, D)

    # Scores with contracted last dims (K consumed untransposed), f32 accumulation.
    scores = jnp.einsum(
        "bqd,bkd->bqk",
        q.astype(jnp.bfloat16), k.astype(jnp.bfloat16),
        preferred_element_type=jnp.float32,
    )                                                                     # (Bt, S, S)

    # Numerically-stable softmax; divide moved to the EUP via approx reciprocal.
    m = jnp.max(scores, axis=-1, keepdims=True)
    p = jnp.exp(scores - m)
    denom = jnp.sum(p, axis=-1, keepdims=True)
    attn = p * pl.reciprocal(denom, approx=True)                          # (Bt, S, S)

    # attn @ V (bf16 operands, f32 acc), then output projection.
    o = jnp.einsum(
        "bqk,bkd->bqd",
        attn.astype(jnp.bfloat16), v.astype(jnp.bfloat16),
        preferred_element_type=jnp.float32,
    )                                                                     # (Bt, S, D)
    o = jnp.dot(
        o.reshape(Bt * S, D).astype(jnp.bfloat16), wo_ref[...],
        preferred_element_type=jnp.float32,
    ).reshape(Bt, S, D)

    out_ref[...] = o.astype(out_ref.dtype)
    attn_ref[...] = attn.astype(attn_ref.dtype)   # "hook capture" -> explicit output


def attention_extractor_forward(x, params, *, batch_block=None):
    """Pallas equivalent of AttentionExtractor.forward.

    Returns (output, attention_maps_dict), mirroring the PyTorch module's
    `(output, self.attention_maps)` return value.
    """
    B, S, D = x.shape
    Bt = B if batch_block is None else batch_block
    assert B % Bt == 0, "batch_block must divide batch"
    G = B // Bt

    # Wrapper-side (one-time): fuse QKV weights, fold the 1/sqrt(D) scale into wq,
    # cast to bf16 for the MXU.
    scale = 1.0 / math.sqrt(D)
    wqkv = jnp.concatenate(
        [params["wq"] * scale, params["wk"], params["wv"]], axis=1
    ).astype(jnp.bfloat16)                                                # (D, 3D)
    wo = params["wo"].astype(jnp.bfloat16)                                # (D, D)

    # Weights are grid-invariant: keep a single untiled VMEM copy (no double-buffering).
    weight_spec = pl.BlockSpec(memory_space=pltpu.MemorySpace.VMEM)

    # TODO(synk): for production shapes (large S/D), present lane-dense (>=128 last dim)
    # output slabs and tile the sequence (grid=(B//Bt, S//TQ)) so the plan also fits
    # v7x's 64 MiB VMEM and shards across both TensorCores.
    out, attn = pl.pallas_call(
        _attention_kernel,
        out_shape=(
            jax.ShapeDtypeStruct((B, S, D), x.dtype),
            jax.ShapeDtypeStruct((B, S, S), jnp.bfloat16),  # bf16 export: half HBM traffic
        ),
        grid_spec=pltpu.PrefetchScalarGridSpec(
            num_scalar_prefetch=0,
            grid=(G,),
            in_specs=[
                pl.BlockSpec((Bt, S, D), lambda g: (g, 0, 0)),  # x
                weight_spec,                                     # wqkv (fused)
                weight_spec,                                     # wo
            ],
            out_specs=[
                pl.BlockSpec((Bt, S, D), lambda g: (g, 0, 0)),  # model output
                pl.BlockSpec((Bt, S, S), lambda g: (g, 0, 0)),  # attention map
            ],
        ),
        compiler_params=pltpu.CompilerParams(
            dimension_semantics=("parallel",),
            vmem_limit_bytes=64 * 1024 * 1024,
        ),
    )(x, wqkv, wo)

    attention_maps = {"model.attention": attn}
    return out, attention_maps


def init_params(key, hidden):
    k1, k2, k3, k4 = jax.random.split(key, 4)
    scale = 1.0 / math.sqrt(hidden)
    return {
        "wq": jax.random.normal(k1, (hidden, hidden), jnp.float32) * scale,
        "wk": jax.random.normal(k2, (hidden, hidden), jnp.float32) * scale,
        "wv": jax.random.normal(k3, (hidden, hidden), jnp.float32) * scale,
        "wo": jax.random.normal(k4, (hidden, hidden), jnp.float32) * scale,
    }


def _reference(x, params):
    """Pure-JAX f32 reference of the same attention block."""
    D = x.shape[-1]
    scale = 1.0 / math.sqrt(D)
    q = jnp.einsum("bsd,de->bse", x, params["wq"]) * scale
    k = jnp.einsum("bsd,de->bse", x, params["wk"])
    v = jnp.einsum("bsd,de->bse", x, params["wv"])
    s = jnp.einsum("bqd,bkd->bqk", q, k)
    attn = jax.nn.softmax(s, axis=-1)
    o = jnp.einsum("bqk,bkd->bqd", attn, v)
    return jnp.einsum("bsd,de->bse", o, params["wo"]), attn


# TODO(synk): the PyTorch hook registration / removal machinery (register_forward_hook,
# named_modules scan) has no Pallas equivalent; attention maps are returned as an
# explicit kernel output instead.

if __name__ == "__main__":
    B, S, D = 2, 8, 32  # batch, sequence, hidden

    key = jax.random.PRNGKey(0)
    kx, kp = jax.random.split(key)
    x = jax.random.normal(kx, (B, S, D), jnp.float32)
    params = init_params(kp, D)

    output, attention_maps = attention_extractor_forward(x, params)
    attn = attention_maps["model.attention"]
    jax.block_until_ready(output)
    jax.block_until_ready(attn)

    ref_out, ref_attn = _reference(x, params)

    # sanity: softmax rows sum to ~1 (loose tolerance: approx reciprocal + bf16 export)
    row_sums = jnp.sum(attn.astype(jnp.float32), axis=-1)
    assert jnp.allclose(row_sums, 1.0, atol=2e-2), "attention rows must sum to ~1"
    assert output.shape == (B, S, D)
    assert attn.shape == (B, S, S)
    # sanity vs. pure-JAX reference (bf16 MXU operands -> loose tolerance)
    assert jnp.allclose(output, ref_out, atol=0.15), "output mismatch vs reference"
    assert jnp.allclose(attn.astype(jnp.float32), ref_attn, atol=0.05), "attn mismatch vs reference"

    print("KERNEL_OK")
</pallas_src>

<mosaic_0001>
module attributes {stable_mosaic.version = 11 : i64} {
  func.func @_attention_kernel(%arg0: i32, %arg1: memref<2x8x32xf32, #tpu.memory_space<vmem>>, %arg2: memref<32x96xbf16, #tpu.memory_space<vmem>>, %arg3: memref<32x32xbf16, #tpu.memory_space<vmem>>, %arg4: memref<2x8x32xf32, #tpu.memory_space<vmem>>, %arg5: memref<2x8x8xbf16, #tpu.memory_space<vmem>>) attributes {dimension_semantics = [#tpu.dimension_semantics<parallel>], iteration_bounds = array<i64: 1>, scalar_prefetch = 0 : i64, scratch_operands = 0 : i64, tpu.core_type = #tpu.core_type<tc>, window_params = [{transform_indices = @transform_0, window_bounds = array<i64: 2, 8, 32>}, {pipeline_mode = #tpu.pipeline_mode<synchronous>, transform_indices = @transform_1, window_bounds = array<i64: 32, 96>}, {pipeline_mode = #tpu.pipeline_mode<synchronous>, transform_indices = @transform_2, window_bounds = array<i64: 32, 32>}, {transform_indices = @transform_3, window_bounds = array<i64: 2, 8, 32>}, {transform_indices = @transform_4, window_bounds = array<i64: 2, 8, 8>}]} {
    %c0 = arith.constant 0 : index
    %c0_0 = arith.constant 0 : index
    %c0_1 = arith.constant 0 : index
    %0 = vector.load %arg1[%c0, %c0_0, %c0_1] : memref<2x8x32xf32, #tpu.memory_space<vmem>>, vector<2x8x32xf32>
    %1 = vector.shape_cast %0 : vector<2x8x32xf32> to vector<16x32xf32>
    %2 = arith.truncf %1 : vector<16x32xf32> to vector<16x32xbf16>
    %c0_2 = arith.constant 0 : index
    %c0_3 = arith.constant 0 : index
    %3 = vector.load %arg2[%c0_2, %c0_3] : memref<32x96xbf16, #tpu.memory_space<vmem>>, vector<32x96xbf16>
    %cst = arith.constant dense<0.000000e+00> : vector<16x96xf32>
    %4 = tpu.matmul %2, %3, %cst {dimension_numbers = #tpu.dot_dimension_numbers<[1], [0], [0], [1], [0, 0, 1, 1], [], []>} : vector<16x32xbf16>, vector<32x96xbf16>, vector<16x96xf32> -> vector<16x96xf32>
    %5 = vector.extract_strided_slice %4 {offsets = [0, 0], sizes = [16, 32], strides = [1, 1]} : vector<16x96xf32> to vector<16x32xf32>
    %6 = vector.shape_cast %5 : vector<16x32xf32> to vector<2x8x32xf32>
    %7 = vector.extract_strided_slice %4 {offsets = [0, 32], sizes = [16, 32], strides = [1, 1]} : vector<16x96xf32> to vector<16x32xf32>
    %8 = vector.shape_cast %7 : vector<16x32xf32> to vector<2x8x32xf32>
    %9 = vector.extract_strided_slice %4 {offsets = [0, 64], sizes = [16, 32], strides = [1, 1]} : vector<16x96xf32> to vector<16x32xf32>
    %10 = vector.shape_cast %9 : vector<16x32xf32> to vector<2x8x32xf32>
    %11 = arith.truncf %6 : vector<2x8x32xf32> to vector<2x8x32xbf16>
    %12 = arith.truncf %8 : vector<2x8x32xf32> to vector<2x8x32xbf16>
    "tpu.trace_start"() <{level = 10 : i32, message = "bqd,bkd->bqk"}> : () -> ()
    %cst_4 = arith.constant dense<0.000000e+00> : vector<2x8x8xf32>
    %13 = tpu.matmul %11, %12, %cst_4 {dimension_numbers = #tpu.dot_dimension_numbers<[2], [2], [1], [1], [0, 0, 0, 1, 1, 1], [0], [0]>} : vector<2x8x32xbf16>, vector<2x8x32xbf16>, vector<2x8x8xf32> -> vector<2x8x8xf32>
    "tpu.trace_stop"() : () -> ()
    %cst_5 = arith.constant dense<0xFF800000> : vector<2x8xf32>
    %14 = vector.multi_reduction <maximumf>, %13, %cst_5 [2] : vector<2x8x8xf32> to vector<2x8xf32>
    %15 = vector.shape_cast %14 : vector<2x8xf32> to vector<2x8x1xf32>
    %16 = vector.broadcast %15 : vector<2x8x1xf32> to vector<2x8x8xf32>
    %17 = arith.subf %13, %16 : vector<2x8x8xf32>
    %18 = math.exp %17 : vector<2x8x8xf32>
    %cst_6 = arith.constant dense<0.000000e+00> : vector<2x8xf32>
    %19 = vector.multi_reduction <add>, %18, %cst_6 [2] : vector<2x8x8xf32> to vector<2x8xf32>
    %20 = vector.shape_cast %19 : vector<2x8xf32> to vector<2x8x1xf32>
    %21 = tpu.reciprocal %20 {approx = true} : vector<2x8x1xf32> -> vector<2x8x1xf32>
    %22 = vector.broadcast %21 : vector<2x8x1xf32> to vector<2x8x8xf32>
    %23 = arith.mulf %18, %22 : vector<2x8x8xf32>
    %24 = arith.truncf %23 : vector<2x8x8xf32> to vector<2x8x8xbf16>
    %25 = arith.truncf %10 : vector<2x8x32xf32> to vector<2x8x32xbf16>
    "tpu.trace_start"() <{level = 10 : i32, message = "bqk,bkd->bqd"}> : () -> ()
    %cst_7 = arith.constant dense<0.000000e+00> : vector<2x8x32xf32>
    %26 = tpu.matmul %24, %25, %cst_7 {dimension_numbers = #tpu.dot_dimension_numbers<[2], [1], [1], [2], [0, 0, 0, 1, 1, 2], [0], [0]>} : vector<2x8x8xbf16>, vector<2x8x32xbf16>, vector<2x8x32xf32> -> vector<2x8x32xf32>
    "tpu.trace_stop"() : () -> ()
    %27 = vector.shape_cast %26 : vector<2x8x32xf32> to vector<16x32xf32>
    %28 = arith.truncf %27 : vector<16x32xf32> to vector<16x32xbf16>
    %c0_8 = arith.constant 0 : index
    %c0_9 = arith.constant 0 : index
    %29 = vector.load %arg3[%c0_8, %c0_9] : memref<32x32xbf16, #tpu.memory_space<vmem>>, vector<32x32xbf16>
    %cst_10 = arith.constant dense<0.000000e+00> : vector<16x32xf32>
    %30 = tpu.matmul %28, %29, %cst_10 {dimension_numbers = #tpu.dot_dimension_numbers<[1], [0], [0], [1], [0, 0, 1, 1], [], []>} : vector<16x32xbf16>, vector<32x32xbf16>, vector<16x32xf32> -> vector<16x32xf32>
    %31 = vector.shape_cast %30 : vector<16x32xf32> to vector<2x8x32xf32>
    %c0_11 = arith.constant 0 : index
    %c0_12 = arith.constant 0 : index
    %c0_13 = arith.constant 0 : index
    %32 = vector.load %arg4[%c0_11, %c0_12, %c0_13] : memref<2x8x32xf32, #tpu.memory_space<vmem>>, vector<2x8x32xf32>
    tpu.vector_store %arg4[%c0_11, %c0_12, %c0_13], %31 {strides = array<i32>} : memref<2x8x32xf32, #tpu.memory_space<vmem>>, vector<2x8x32xf32>,
    %33 = arith.truncf %23 : vector<2x8x8xf32> to vector<2x8x8xbf16>
    %c0_14 = arith.constant 0 : index
    %c0_15 = arith.constant 0 : index
    %c0_16 = arith.constant 0 : index
    %34 = vector.load %arg5[%c0_14, %c0_15, %c0_16] : memref<2x8x8xbf16, #tpu.memory_space<vmem>>, vector<2x8x8xbf16>
    tpu.vector_store %arg5[%c0_14, %c0_15, %c0_16], %33 {strides = array<i32>} : memref<2x8x8xbf16, #tpu.memory_space<vmem>>, vector<2x8x8xbf16>,
    return
  }
  func.func @transform_0(%arg0: i32) -> (i32, i32, i32) {
    %c0_i32 = arith.constant 0 : i32
    %c0_i32_0 = arith.constant 0 : i32
    %c0_i32_1 = arith.constant 0 : i32
    return %arg0, %c0_i32, %c0_i32_0 : i32, i32, i32
  }
  func.func @transform_1(%arg0: i32) -> (i32, i32) {
    %c0_i32 = arith.constant 0 : i32
    %c0_i32_0 = arith.constant 0 : i32
    %c0_i32_1 = arith.constant 0 : i32
    return %c0_i32, %c0_i32_0 : i32, i32
  }
  func.func @transform_2(%arg0: i32) -> (i32, i32) {
    %c0_i32 = arith.constant 0 : i32
    %c0_i32_0 = arith.constant 0 : i32
    %c0_i32_1 = arith.constant 0 : i32
    return %c0_i32, %c0_i32_0 : i32, i32
  }
  func.func @transform_3(%arg0: i32) -> (i32, i32, i32) {
    %c0_i32 = arith.constant 0 : i32
    %c0_i32_0 = arith.constant 0 : i32
    %c0_i32_1 = arith.constant 0 : i32
    return %arg0, %c0_i32, %c0_i32_0 : i32, i32, i32
  }
  func.func @transform_4(%arg0: i32) -> (i32, i32, i32) {
    %c0_i32 = arith.constant 0 : i32
    %c0_i32_0 = arith.constant 0 : i32
    %c0_i32_1 = arith.constant 0 : i32
    return %arg0, %c0_i32, %c0_i32_0 : i32, i32, i32
  }
}

</mosaic_0001>

<llo_original>
// kernel: tpu_custom_call.1
$region0: #{tpu_custom_call.1}
  #allocation0 [shape = 'u32[]', space=smem, size = 0x4, offset = 0x4, fixed_abs, tag = 'smem constant byte address 0x4 - core index']
  #allocation1 [shape = 'u32[72,128]{1,0:T(1,128)}', space=vmem, size = 0x9000, scoped, tag = 'internal scratch']
  %s0 = inlined_call_operand.hbm [shape: f32[2,8,32], index: 0, kind: input, shape index: {}]
  %s1 = inlined_call_operand.hbm [shape: bf16[32,96], index: 1, kind: input, shape index: {}]
  %s2 = inlined_call_operand.hbm [shape: bf16[32,32], index: 2, kind: input, shape index: {}]
  %s3 = inlined_call_operand.hbm [shape: f32[2,8,32], index: 3, kind: output, shape index: {0}]
  %s4 = inlined_call_operand.hbm [shape: bf16[2,8,8], index: 4, kind: output, shape index: {1}]
  %5 = xla_tuple %s3, %s4
  %s6 = sld [smem:[#allocation0]]
  $region42: #{tpu_custom_call.1} parent=0
    _
  %s8 = ssub.s32 1, %s6
  %s9 = scalar_select 0, %s8, %s6
  $region1: #{tpu_custom_call.1} parent=0
    #allocation2 [shape = 'u8[8192]{0}', space=vmem, size = 0x2000, scoped, tag = 'input window, operand 0, single buffered']
    #allocation3 [shape = 's32[1]{0}', space=sflag, size = 0x4, scoped, tag = 'scoped memory for tpu_custom_call.1']
    #allocation4 [shape = 's32[1]{0}', space=sflag, size = 0x4, scoped, tag = 'scoped memory for tpu_custom_call.1']
    #allocation5 [shape = 'u8[8192]{0}', space=vmem, size = 0x2000, scoped, tag = 'input window, operand 1, single buffered']
    #allocation6 [shape = 's32[1]{0}', space=sflag, size = 0x4, scoped, tag = 'scoped memory for tpu_custom_call.1']
    #allocation7 [shape = 'u8[8192]{0}', space=vmem, size = 0x2000, scoped, tag = 'input window, operand 2, single buffered']
    #allocation8 [shape = 'u8[8192]{0}', space=vmem, size = 0x2000, scoped, tag = 'output window, operand 0, single buffered']
    #allocation9 [shape = 'u8[4096]{0}', space=vmem, size = 0x1000, scoped, tag = 'output window, operand 1, single buffered']
    #allocation10 [shape = 's32[1]{0}', space=sflag, size = 0x4, scoped, tag = 'scoped memory for tpu_custom_call.1']
    %10 = vsyncpa [#allocation3], 0
    %11 = vsyncpa [#allocation6], 0
    %12 = vsyncpa [#allocation4], 0
    %13 = vsyncpa [#allocation10], 0
    // Predicated region
    $region2: #{tpu_custom_call.1} parent=1 // pred_check
      _
    $region3: #{tpu_custom_call.1} parent=1 // pred_check_branch
      %15 = sbr.rel (0) target = $region5
    $region4: #{tpu_custom_call.1} parent=1 // pred_region
      %17 = vsyncadd [#allocation3], 0
      %s18 = sshll.u32 %s0, 4
      %s19 = int_to_ptr.hbm [resolvable:$true] %s18
      %s20 = sshll.u32 [#allocation2], 4
      %s21 = int_to_ptr.vmem [resolvable:$true] %s20
      %26 = dma.hbm_to_vmem [thread:$0]  %s19, 256, %s21, [#allocation3], 128, 128, 8
    $region5: #{tpu_custom_call.1} parent=1 // pred_fallthru
      _
    // Predicated region
    $region6: #{tpu_custom_call.1} parent=1 // pred_check
      _
    $region7: #{tpu_custom_call.1} parent=1 // pred_check_branch
      %28 = sbr.rel (0) target = $region9
    $region8: #{tpu_custom_call.1} parent=1 // pred_region
      %30 = vsyncadd [#allocation6], 0
      %s31 = sshll.u32 %s1, 4
      %s32 = int_to_ptr.hbm [resolvable:$true] %s31
      %s33 = sshll.u32 [#allocation5], 4
      %s34 = int_to_ptr.vmem [resolvable:$true] %s33
      %39 = dma.hbm_to_vmem [thread:$0]  %s32, 256, %s34, [#allocation6], 64, 64, 4
    $region9: #{tpu_custom_call.1} parent=1 // pred_fallthru
      _
    // Predicated region
    $region10: #{tpu_custom_call.1} parent=1 // pred_check
      _
    $region11: #{tpu_custom_call.1} parent=1 // pred_check_branch
      %41 = sbr.rel (0) target = $region13
    $region12: #{tpu_custom_call.1} parent=1 // pred_region
      %43 = vsyncadd [#allocation6], 0
      %s44 = sshll.u32 %s2, 4
      %s45 = int_to_ptr.hbm [resolvable:$true] %s44
      %s46 = sshll.u32 [#allocation7], 4
      %s47 = int_to_ptr.vmem [resolvable:$true] %s46
      %52 = dma.hbm_to_vmem [thread:$0]  %s45, 256, %s47, [#allocation6], 64, 64, 4
    $region13: #{tpu_custom_call.1} parent=1 // pred_fallthru
      _
    // Predicated region
    $region14: #{tpu_custom_call.1} parent=1 // pred_check
      _
    $region15: #{tpu_custom_call.1} parent=1 // pred_check_branch
      %54 = sbr.rel (0) target = $region17
    $region16: #{tpu_custom_call.1} parent=1 // pred_region
      %56 = dma.done [#allocation3], 256
    $region17: #{tpu_custom_call.1} parent=1 // pred_fallthru
      _
    // Predicated region
    $region18: #{tpu_custom_call.1} parent=1 // pred_check
      _
    $region19: #{tpu_custom_call.1} parent=1 // pred_check_branch
      %58 = sbr.rel (0) target = $region21
    $region20: #{tpu_custom_call.1} parent=1 // pred_region
      %60 = dma.done [#allocation6], 256
    $region21: #{tpu_custom_call.1} parent=1 // pred_fallthru
      _
    // Predicated region
    $region22: #{tpu_custom_call.1} parent=1 // pred_check
      _
    $region23: #{tpu_custom_call.1} parent=1 // pred_check_branch
      %62 = sbr.rel (0) target = $region25
    $region24: #{tpu_custom_call.1} parent=1 // pred_region
      %64 = dma.done [#allocation6], 256
    $region25: #{tpu_custom_call.1} parent=1 // pred_fallthru
      _
    %v66 = vld [vmem:[#allocation2] sm:$0xff]
    %v67 = vld [vmem:[#allocation2 + $0x8] sm:$0xff]
    %v68 = vpack.c.bf16 %v67, %v66
    %v69 = vld [vmem:[#allocation5] sm:$0xf]
    %v70 = vld [vmem:[#allocation5 + $0x4] sm:$0xf]
    %v71 = vld [vmem:[#allocation5 + $0x8] sm:$0xf]
    %v72 = vld [vmem:[#allocation5 + $0xc] sm:$0xf]
    %v77 = vunpack.c.l.b16 %v69
    %v78 = vunpack.c.l.b16 %v70
    %v79 = vunpack.c.l.b16 %v71
    %v80 = vunpack.c.l.b16 %v72
    %v81 = vpack.c.b16 %v78, %v77
    %v82 = vpack.c.b16 %v80, %v79
    %vm85 = vcmask 261120
    %v87 = vsel %vm85, %v68, 0
    %89 = vmatpush.bf16.msra.mxu0 0
    %90 = vmatpush.bf16.msra.mxu0 0
    %91 = vmatpush.bf16.msra.mxu0 0
    %92 = vmatpush.bf16.msra.mxu0 0
    %93 = vmatpush.bf16.msra.mxu0 0
    %94 = vmatpush.bf16.msra.mxu0 0
    %95 = vmatpush.bf16.msra.mxu0 %v82
    %96 = vmatpush.bf16.msra.mxu0 %v81
    %97 = vmatmul.bf16.gmra.mxu0 %v87
    %v98 = vpop.f32.mrf.mxu0
    %v99 = vadd.f32 0.0, %v98
    %v100 = vpop.f32.mrf.mxu0
    %v101 = vadd.f32 0.0, %v100
    %102 = vdwg.mxu0
    %v103 = vpack.c.bf16 %v99, %v99
    %v104 = vpack.c.bf16 %v101, %v101
    %v106 = vunpack.c.l.b16 %v103
    %v107 = vpack.c.b16 %v106, %v106
    %108 = vrot.lane.b32.xlu0 %v107, 96
    %v109 = vpop.permute.xlu0 %108
    %v111 = vsel %vm85, %v103, 0
    %v114 = vsel %vm85, %v109, 0
    %116 = vmatpush.bf16.xpose.msra.mxu0 0
    %117 = vmatpush.bf16.xpose.msra.mxu0 0
    %118 = vmatpush.bf16.xpose.msra.mxu0 0
    %119 = vmatpush.bf16.xpose.msra.mxu0 0
    %120 = vmatpush.bf16.xpose.msra.mxu0 0
    %121 = vmatpush.bf16.xpose.msra.mxu0 0
    %122 = vmatpush.bf16.xpose.msra.mxu0 0
    %123 = vmatpush.bf16.xpose.msra.mxu0 %v114
    %124 = vmatmul.bf16.gmra.mxu0 %v111
    %v125 = vpop.f32.mrf.mxu0
    %v126 = vadd.f32 0.0, %v125
    %v127 = vpop.f32.mrf.mxu0
    %128 = vdwg.mxu0
    %v130 = vunpack.c.l.b16 %v104
    %v131 = vpack.c.b16 %v130, %v130
    %132 = vrot.lane.b32.xlu0 %v131, 96
    %v133 = vpop.permute.xlu0 %132
    %v135 = vsel %vm85, %v104, 0
    %v138 = vsel %vm85, %v133, 0
    %140 = vmatpush.bf16.xpose.msra.mxu0 0
    %141 = vmatpush.bf16.xpose.msra.mxu0 0
    %142 = vmatpush.bf16.xpose.msra.mxu0 0
    %143 = vmatpush.bf16.xpose.msra.mxu0 0
    %144 = vmatpush.bf16.xpose.msra.mxu0 0
    %145 = vmatpush.bf16.xpose.msra.mxu0 0
    %146 = vmatpush.bf16.xpose.msra.mxu0 0
    %147 = vmatpush.bf16.xpose.msra.mxu0 %v138
    %148 = vmatmul.bf16.gmra.mxu0 %v135
    %v149 = vpop.f32.mrf.mxu0
    %v150 = vadd.f32 0.0, %v149
    %v151 = vpop.f32.mrf.mxu0
    %152 = vdwg.mxu0
    %vm153 = vcmask 64512
    %v154 = vsel %vm153, %v126, -inf
    %155 = vmax.xlane.f32.xlu0 %v154
    %v156 = vpop.xlane.xlu0 %155
    %v157 = vsel %vm153, %v150, -inf
    %158 = vmax.xlane.f32.xlu0 %v157
    %v159 = vpop.xlane.xlu0 %158
    %v160 = vsub.f32 %v126, %v156
    %v161 = vsub.f32 %v150, %v159
    %v162 = vmul.f32 %v160, 1.442695
    %v163 = vpow.pop %v162
    %v164 = vmul.f32 %v161, 1.442695
    %v165 = vpow.pop %v164
    %v166 = vsel %vm153, %v163, 0.0
    %167 = vadd.xlane.f32.xlu0 %v166
    %v168 = vpop.xlane.xlu0 %167
    %v169 = vsel %vm153, %v165, 0.0
    %170 = vadd.xlane.f32.xlu0 %v169
    %v171 = vpop.xlane.xlu0 %170
    %v172 = vrcp.pop %v168
    %v173 = vrcp.pop %v171
    %v174 = vmul.f32 %v163, %v172
    %v175 = vmul.f32 %v165, %v173
    %v176 = vpack.c.bf16 %v174, %v174
    %v177 = vpack.c.bf16 %v175, %v175
    %178 = vrot.lane.b32.xlu0 %v107, 64
    %v179 = vpop.permute.xlu0 %178
    %v181 = vsel %vm153, %v176, 0
    %vm183 = vcmask 1043456
    %v185 = vsel %vm183, %v179, 0
    %187 = vmatpush.bf16.msra.mxu0 0
    %188 = vmatpush.bf16.msra.mxu0 0
    %189 = vmatpush.bf16.msra.mxu0 0
    %190 = vmatpush.bf16.msra.mxu0 0
    %191 = vmatpush.bf16.msra.mxu0 0
    %192 = vmatpush.bf16.msra.mxu0 0
    %193 = vmatpush.bf16.msra.mxu0 0
    %194 = vmatpush.bf16.msra.mxu0 %v185
    %195 = vmatmul.bf16.gmra.mxu0 %v181
    %v196 = vpop.f32.mrf.mxu0
    %v197 = vadd.f32 0.0, %v196
    %v198 = vpop.f32.mrf.mxu0
    %199 = vdwg.mxu0
    %200 = vrot.lane.b32.xlu0 %v131, 64
    %v201 = vpop.permute.xlu0 %200
    %v203 = vsel %vm153, %v177, 0
    %v206 = vsel %vm183, %v201, 0
    %208 = vmatpush.bf16.msra.mxu0 0
    %209 = vmatpush.bf16.msra.mxu0 0
    %210 = vmatpush.bf16.msra.mxu0 0
    %211 = vmatpush.bf16.msra.mxu0 0
    %212 = vmatpush.bf16.msra.mxu0 0
    %213 = vmatpush.bf16.msra.mxu0 0
    %214 = vmatpush.bf16.msra.mxu0 0
    %215 = vmatpush.bf16.msra.mxu0 %v206
    %216 = vmatmul.bf16.gmra.mxu0 %v203
    %v217 = vpop.f32.mrf.mxu0
    %v218 = vadd.f32 0.0, %v217
    %v219 = vpop.f32.mrf.mxu0
    %220 = vdwg.mxu0
    %v221 = vpack.c.bf16 %v218, %v197
    %v222 = vld [vmem:[#allocation7] sm:$0xf]
    %v223 = vld [vmem:[#allocation7 + $0x4] sm:$0xf]
    %v224 = vld [vmem:[#allocation7 + $0x8] sm:$0xf]
    %v225 = vld [vmem:[#allocation7 + $0xc] sm:$0xf]
    %v230 = vunpack.c.l.b16 %v222
    %v231 = vunpack.c.l.b16 %v223
    %v232 = vunpack.c.l.b16 %v224
    %v233 = vunpack.c.l.b16 %v225
    %v234 = vpack.c.b16 %v231, %v230
    %v235 = vpack.c.b16 %v233, %v232
    %v239 = vsel %vm85, %v221, 0
    %241 = vmatpush.bf16.msra.mxu0 0
    %242 = vmatpush.bf16.msra.mxu0 0
    %243 = vmatpush.bf16.msra.mxu0 0
    %244 = vmatpush.bf16.msra.mxu0 0
    %245 = vmatpush.bf16.msra.mxu0 0
    %246 = vmatpush.bf16.msra.mxu0 0
    %247 = vmatpush.bf16.msra.mxu0 %v235
    %248 = vmatpush.bf16.msra.mxu0 %v234
    %249 = vmatmul.bf16.gmra.mxu0 %v239
    %v250 = vpop.f32.mrf.mxu0
    %v251 = vadd.f32 0.0, %v250
    %v252 = vpop.f32.mrf.mxu0
    %v253 = vadd.f32 0.0, %v252
    %254 = vdwg.mxu0
    %255 = vst.msk [vmem:[#allocation8] sm:$0xff] %vm85, %v251
    %256 = vst.msk [vmem:[#allocation8 + $0x8] sm:$0xff] %vm85, %v253
    %vm257 = vcmask 60416
    %258 = vst.msk [vmem:[#allocation9] sm:$0xf] %vm257, %v176
    %259 = vst.msk [vmem:[#allocation9 + $0x4] sm:$0xf] %vm257, %v177
    // Predicated region
    $region26: #{tpu_custom_call.1} parent=1 // pred_check
      _
    $region27: #{tpu_custom_call.1} parent=1 // pred_check_branch
      %261 = sbr.rel (0) target = $region29
    $region28: #{tpu_custom_call.1} parent=1 // pred_region
      %263 = vsyncadd [#allocation4], 0
      %s264 = sshll.u32 [#allocation8], 4
      %s265 = int_to_ptr.vmem [resolvable:$true] %s264
      %s266 = sshll.u32 %s3, 4
      %s267 = int_to_ptr.hbm [resolvable:$true] %s266
      %272 = dma.vmem_to_hbm [thread:$0]  %s265, 256, %s267, [#allocation4], 128, 128, 8
    $region29: #{tpu_custom_call.1} parent=1 // pred_fallthru
      _
    // Predicated region
    $region30: #{tpu_custom_call.1} parent=1 // pred_check
      _
    $region31: #{tpu_custom_call.1} parent=1 // pred_check_branch
      %274 = sbr.rel (0) target = $region33
    $region32: #{tpu_custom_call.1} parent=1 // pred_region
      %276 = vsyncadd [#allocation10], 0
      %s277 = sshll.u32 [#allocation9], 4
      %s278 = int_to_ptr.vmem [resolvable:$true] %s277
      %s279 = sshll.u32 %s4, 4
      %s280 = int_to_ptr.hbm [resolvable:$true] %s279
      %285 = dma.vmem_to_hbm [thread:$0]  %s278, 128, %s280, [#allocation10], 64, 64, 4
    $region33: #{tpu_custom_call.1} parent=1 // pred_fallthru
      _
    // Predicated region
    $region34: #{tpu_custom_call.1} parent=1 // pred_check
      _
    $region35: #{tpu_custom_call.1} parent=1 // pred_check_branch
      %287 = sbr.rel (0) target = $region37
    $region36: #{tpu_custom_call.1} parent=1 // pred_region
      %289 = dma.done [#allocation4], 256
    $region37: #{tpu_custom_call.1} parent=1 // pred_fallthru
      _
    // Predicated region
    $region38: #{tpu_custom_call.1} parent=1 // pred_check
      _
    $region39: #{tpu_custom_call.1} parent=1 // pred_check_branch
      %291 = sbr.rel (0) target = $region41
    $region40: #{tpu_custom_call.1} parent=1 // pred_region
      %293 = dma.done [#allocation10], 128
    $region41: #{tpu_custom_call.1} parent=1 // pred_fallthru
      _
    %294 = vsyncpa [#allocation3], 1
    %295 = vsyncpa [#allocation6], 1
    %296 = vsyncpa [#allocation4], 1
    %297 = vsyncpa [#allocation10], 1

</llo_original>
